<compile_context>
chip_gen: v6e
topology: v6e:2x2x1
jax: 0.10.0
libtpu: 0.0.40
codegen_flags: <defaults>
</compile_context>

<pallas_src>
import math

import numpy as np

import jax
import jax.numpy as jnp
from jax.experimental import pallas as pl
from jax.experimental.pallas import tpu as pltpu


def _normalize_kernel(scale_ref, shift_ref, x_ref, o_ref):
    # scale/shift blocks are (TR,1), (1,TC) or (TR,TC) f32 — jnp broadcasting
    # handles all three against the (TR, TC) data block.
    x = x_ref[...].astype(jnp.float32)
    o_ref[...] = (x * scale_ref[...] + shift_ref[...]).astype(o_ref.dtype)


def _check_nonzero_std(std):
    """Reject std == 0 when the value is concrete (skip for traced values)."""
    try:
        std_host = np.asarray(std)
    except Exception:
        return
    if np.any(std_host == 0):
        raise ValueError("std must not contain zeros (division by zero).")


def _canon_param(p, N, C, name):
    """Canonicalize mean/std (float, scalar, (C,), (1,C) or (N,C)) to f32 (1,C) or (N,C)."""
    p = jnp.asarray(p, dtype=jnp.float32)
    if p.size == 1:
        return jnp.full((1, C), jnp.reshape(p, ()), dtype=jnp.float32)
    if p.ndim >= 2 and p.shape[0] == N and p.shape[1] == C and p.size == N * C:
        return p.reshape(N, C)                       # per-sample, per-channel
    flat = p.reshape(-1)
    if flat.shape[0] != C:
        raise ValueError(
            f"{name} length and number of channels do not match. "
            f"Got {p.shape} and C={C}."
        )
    return flat.reshape(1, C)                        # per-channel


def _tile_sizes(rows, cols, bytes_per_elem, min_itemsize):
    """Pick (TR, TC) block sizes: lane-dense, ~8 MiB combined, (8,128)-legal."""
    LANE = 128
    SUB = {4: 8, 2: 16, 1: 32}.get(min_itemsize, 8)   # dtype-aware sublane packing
    MAX_LANE_TILE = 64 * 1024
    TARGET_BYTES = 8 * 1024 * 1024                    # in + out (+per-elem params) per block
    MIN_BLOCK_BYTES = 512 * 1024
    MIN_STEPS = 8                                     # feed both v7x TensorCores

    if cols % LANE == 0:
        TC = min(cols, MAX_LANE_TILE)                 # large multiple of 128
    elif cols < MAX_LANE_TILE:
        TC = cols                                     # full extent (always legal)
    else:
        TC = MAX_LANE_TILE                            # boundary block gets masked

    row_budget = max(1, TARGET_BYTES // (TC * bytes_per_elem))
    if rows <= SUB or rows <= row_budget:
        TR = rows                                     # full sublane extent (always legal)
    else:
        TR = max(SUB, (min(row_budget, rows) // SUB) * SUB)

    def steps(tr, tc):
        return (-(-rows // tr)) * (-(-cols // tc))

    # Grid shaping: expose enough evenly-splittable blocks for megacore (v7x),
    # while keeping blocks lane-dense, (8,128)-legal, and >= MIN_BLOCK_BYTES.
    while steps(TR, TC) < MIN_STEPS:
        if TC % 256 == 0 and TR * (TC // 2) * bytes_per_elem >= MIN_BLOCK_BYTES:
            TC //= 2
        elif TR % (2 * SUB) == 0 and (TR // 2) * TC * bytes_per_elem >= MIN_BLOCK_BYTES:
            TR //= 2
        else:
            break
    return TR, TC


def _param_spec(p, TR, TC):
    """BlockSpec for a scale/shift array shaped (1|R, 1|Cols) matching the data tiling."""
    pr = TR if p.shape[0] > 1 else 1
    pc = TC if p.shape[1] > 1 else 1
    if pr == 1 and pc == 1:
        idx = lambda i, j: (0, 0)
    elif pr == 1:
        idx = lambda i, j: (0, j)
    elif pc == 1:
        idx = lambda i, j: (i, 0)
    else:
        idx = lambda i, j: (i, j)
    return pl.BlockSpec((pr, pc), idx)


def normalize_pallas(x: jax.Array, mean, std, *, donate_input: bool = False) -> jax.Array:
    """Normalize a (*, C, ...) tensor (channels at dim 1) with per-channel mean/std."""
    if x.ndim < 2:
        raise ValueError(f"Expected input with at least 2 dims (*, C, ...), got {x.shape}")
    shape = x.shape
    N, C = int(shape[0]), int(shape[1])
    HW = int(math.prod(shape[2:])) if x.ndim > 2 else 1

    in_dtype = x.dtype
    # kornia returns floats; silently truncating back to int would be wrong.
    if jnp.issubdtype(in_dtype, jnp.integer) or in_dtype == jnp.bool_:
        out_dtype = jnp.float32
    else:
        out_dtype = in_dtype

    _check_nonzero_std(std)
    mean2 = _canon_param(mean, N, C, "mean")          # (1,C) or (N,C) f32
    std2 = _canon_param(std, N, C, "std")
    scale2 = 1.0 / std2                               # out = x * scale + shift
    shift2 = -(mean2 / std2)

    if HW >= 128:
        # Row-per-(n, c) layout: lane axis is the (large) spatial extent.
        rows, cols = N * C, HW
        x2 = x.reshape(rows, cols)
        scale = jnp.broadcast_to(scale2, (N, C)).reshape(rows, 1)
        shift = jnp.broadcast_to(shift2, (N, C)).reshape(rows, 1)
    else:
        # Small-spatial / (B, C) fallback: keep the lane axis as wide as
        # possible by folding channels (and tiny spatial) into the lane dim.
        rows, cols = N, C * HW
        x2 = x.reshape(rows, cols)
        scale = jnp.repeat(scale2, HW, axis=1) if HW > 1 else scale2
        shift = jnp.repeat(shift2, HW, axis=1) if HW > 1 else shift2

    in_item = jnp.dtype(in_dtype).itemsize
    out_item = jnp.dtype(out_dtype).itemsize
    per_elem = in_item + out_item
    for p in (scale, shift):
        if p.shape[0] > 1 and p.shape[1] > 1:         # per-sample small-HW case
            per_elem += 4

    TR, TC = _tile_sizes(rows, cols, per_elem, min(in_item, out_item))
    grid = (-(-rows // TR), -(-cols // TC))

    bytes_accessed = rows * cols * (in_item + out_item) + int(scale.size) * 4 + int(shift.size) * 4
    cost = pl.CostEstimate(
        flops=2 * rows * cols, transcendentals=0, bytes_accessed=int(bytes_accessed)
    )

    io_aliases = {}
    if donate_input and out_dtype == in_dtype:
        io_aliases = {2: 0}                           # x2 (operand 2) -> output 0

    out2 = pl.pallas_call(
        _normalize_kernel,
        out_shape=jax.ShapeDtypeStruct((rows, cols), out_dtype),
        grid_spec=pltpu.PrefetchScalarGridSpec(
            num_scalar_prefetch=0,
            grid=grid,
            in_specs=[
                _param_spec(scale, TR, TC),                     # scale
                _param_spec(shift, TR, TC),                     # shift
                pl.BlockSpec((TR, TC), lambda i, j: (i, j)),    # x
            ],
            out_specs=pl.BlockSpec((TR, TC), lambda i, j: (i, j)),
        ),
        compiler_params=pltpu.CompilerParams(
            dimension_semantics=("parallel", "parallel"),
            vmem_limit_bytes=32 * 1024 * 1024,  # safe on v5e/v6e/v7x; ~16 MiB actually used
        ),
        cost_estimate=cost,
        input_output_aliases=io_aliases,
    )(scale, shift, x2)

    return out2.reshape(shape)


class Normalize:
    """JAX/Pallas counterpart of kornia's Normalize module."""

    def __init__(self, mean, std):
        self.mean = mean
        self.std = std

    def __call__(self, x: jax.Array) -> jax.Array:
        return normalize_pallas(x, self.mean, self.std)

    def __repr__(self):
        return f"Normalize(mean={self.mean}, std={self.std})"


if __name__ == "__main__":
    key = jax.random.PRNGKey(0)
    N, C, H, W = 2, 4, 16, 16
    x = jax.random.uniform(key, (N, C, H, W), dtype=jnp.float32) * 255.0

    # Per-channel mean/std.
    mean = jnp.array([0.0, 10.0, 20.0, 30.0], dtype=jnp.float32)
    std = jnp.array([255.0, 128.0, 64.0, 32.0], dtype=jnp.float32)

    out = jax.block_until_ready(Normalize(mean, std)(x))
    ref = (x - mean[None, :, None, None]) / std[None, :, None, None]
    assert out.shape == x.shape and out.dtype == x.dtype
    # scale/shift (mul-by-reciprocal) differs from a true divide by ~ulps.
    assert jnp.allclose(out, ref, rtol=1e-5, atol=1e-5)

    # Float mean/std path (kornia docstring example).
    out2 = jax.block_until_ready(Normalize(0.0, 255.0)(x))
    assert jnp.allclose(out2, x / 255.0, rtol=1e-5, atol=1e-5)

    # (1, C)-shaped mean/std + non-128-aligned spatial dims (small-HW path),
    # like torch.rand(1, 4, 3, 3) in the kornia docstring.
    x_small = jax.random.uniform(jax.random.PRNGKey(1), (1, 4, 3, 3), dtype=jnp.float32)
    out3 = jax.block_until_ready(
        Normalize(jnp.zeros((1, 4), jnp.float32), 255.0 * jnp.ones((1, 4), jnp.float32))(x_small)
    )
    assert out3.shape == x_small.shape
    assert jnp.allclose(out3, x_small / 255.0, rtol=1e-5, atol=1e-5)

    out4 = jax.block_until_ready(Normalize(mean, std)(x_small))
    ref4 = (x_small - mean[None, :, None, None]) / std[None, :, None, None]
    assert jnp.allclose(out4, ref4, rtol=1e-5, atol=1e-5)

    # Pure 2-D (B, C) feature input (HW == 1, lane-dense fallback path).
    x2d = jax.random.normal(jax.random.PRNGKey(2), (16, 256), dtype=jnp.float32)
    m2d = jnp.linspace(-1.0, 1.0, 256, dtype=jnp.float32)
    s2d = jnp.linspace(0.5, 2.0, 256, dtype=jnp.float32)
    out5 = jax.block_until_ready(normalize_pallas(x2d, m2d, s2d))
    ref5 = (x2d - m2d[None, :]) / s2d[None, :]
    assert jnp.allclose(out5, ref5, rtol=1e-5, atol=1e-5)

    print("KERNEL_OK")
</pallas_src>

<mosaic_0001>
module attributes {stable_mosaic.version = 11 : i64} {
  func.func @_normalize_kernel(%arg0: i32, %arg1: i32, %arg2: memref<8x1xf32, #tpu.memory_space<vmem>>, %arg3: memref<8x1xf32, #tpu.memory_space<vmem>>, %arg4: memref<8x256xf32, #tpu.memory_space<vmem>>, %arg5: memref<8x256xf32, #tpu.memory_space<vmem>>) attributes {dimension_semantics = [#tpu.dimension_semantics<parallel>, #tpu.dimension_semantics<parallel>], iteration_bounds = array<i64: 1, 1>, scalar_prefetch = 0 : i64, scratch_operands = 0 : i64, tpu.core_type = #tpu.core_type<tc>, window_params = [{transform_indices = @transform_0, window_bounds = array<i64: 8, 1>}, {transform_indices = @transform_1, window_bounds = array<i64: 8, 1>}, {transform_indices = @transform_2, window_bounds = array<i64: 8, 256>}, {transform_indices = @transform_3, window_bounds = array<i64: 8, 256>}]} {
    %c0 = arith.constant 0 : index
    %c0_0 = arith.constant 0 : index
    %0 = vector.load %arg4[%c0, %c0_0] : memref<8x256xf32, #tpu.memory_space<vmem>>, vector<8x256xf32>
    %c0_1 = arith.constant 0 : index
    %c0_2 = arith.constant 0 : index
    %1 = vector.load %arg2[%c0_1, %c0_2] : memref<8x1xf32, #tpu.memory_space<vmem>>, vector<8x1xf32>
    %2 = vector.broadcast %1 : vector<8x1xf32> to vector<8x256xf32>
    %3 = arith.mulf %0, %2 : vector<8x256xf32>
    %c0_3 = arith.constant 0 : index
    %c0_4 = arith.constant 0 : index
    %4 = vector.load %arg3[%c0_3, %c0_4] : memref<8x1xf32, #tpu.memory_space<vmem>>, vector<8x1xf32>
    %5 = vector.broadcast %4 : vector<8x1xf32> to vector<8x256xf32>
    %6 = arith.addf %3, %5 : vector<8x256xf32>
    %c0_5 = arith.constant 0 : index
    %c0_6 = arith.constant 0 : index
    %7 = vector.load %arg5[%c0_5, %c0_6] : memref<8x256xf32, #tpu.memory_space<vmem>>, vector<8x256xf32>
    tpu.vector_store %arg5[%c0_5, %c0_6], %6 {strides = array<i32>} : memref<8x256xf32, #tpu.memory_space<vmem>>, vector<8x256xf32>,
    return
  }
  func.func @transform_0(%arg0: i32, %arg1: i32) -> (i32, i32) {
    %c0_i32 = arith.constant 0 : i32
    %c0_i32_0 = arith.constant 0 : i32
    return %arg0, %c0_i32 : i32, i32
  }
  func.func @transform_1(%arg0: i32, %arg1: i32) -> (i32, i32) {
    %c0_i32 = arith.constant 0 : i32
    %c0_i32_0 = arith.constant 0 : i32
    return %arg0, %c0_i32 : i32, i32
  }
  func.func @transform_2(%arg0: i32, %arg1: i32) -> (i32, i32) {
    %c0_i32 = arith.constant 0 : i32
    return %arg0, %arg1 : i32, i32
  }
  func.func @transform_3(%arg0: i32, %arg1: i32) -> (i32, i32) {
    %c0_i32 = arith.constant 0 : i32
    return %arg0, %arg1 : i32, i32
  }
}

</mosaic_0001>

<llo_original>
// kernel: tpu_custom_call.1
$region0: #{tpu_custom_call.1}
  #allocation0 [shape = 'u32[]', space=smem, size = 0x4, offset = 0x4, fixed_abs, tag = 'smem constant byte address 0x4 - core index']
  #allocation1 [shape = 'u32[144,128]{1,0:T(1,128)}', space=vmem, size = 0x12000, scoped, tag = 'internal scratch']
  %s0 = inlined_call_operand.vmem [shape: f32[8,1], index: 0, kind: input, shape index: {}]
  %s1 = inlined_call_operand.vmem [shape: f32[8,1], index: 1, kind: input, shape index: {}]
  %s2 = inlined_call_operand.vmem [shape: f32[8,256], index: 2, kind: input, shape index: {}]
  %s3 = inlined_call_operand.hbm [shape: f32[8,256], index: 3, kind: output, shape index: {}]
  %s4 = sld [smem:[#allocation0]]
  $region22: #{tpu_custom_call.1} parent=0
    _
  %s6 = ssub.s32 1, %s4
  %s7 = scalar_select 0, %s6, %s4
  $region1: #{tpu_custom_call.1} parent=0
    #allocation2 [shape = 'u8[8192]{0}', space=vmem, size = 0x2000, scoped, tag = 'output window, operand 0, single buffered']
    #allocation3 [shape = 's32[1]{0}', space=sflag, size = 0x4, scoped, tag = 'scoped memory for tpu_custom_call.1']
    %8 = vsyncpa [#allocation3], 0
    // Predicated region
    $region2: #{tpu_custom_call.1} parent=1 // pred_check
      _
    $region3: #{tpu_custom_call.1} parent=1 // pred_check_branch
      %10 = sbr.rel (0) target = $region5
    $region4: #{tpu_custom_call.1} parent=1 // pred_region
      _
    $region5: #{tpu_custom_call.1} parent=1 // pred_fallthru
      _
    // Predicated region
    $region6: #{tpu_custom_call.1} parent=1 // pred_check
      _
    $region7: #{tpu_custom_call.1} parent=1 // pred_check_branch
      %12 = sbr.rel (0) target = $region9
    $region8: #{tpu_custom_call.1} parent=1 // pred_region
      _
    $region9: #{tpu_custom_call.1} parent=1 // pred_fallthru
      _
    // Predicated region
    $region10: #{tpu_custom_call.1} parent=1 // pred_check
      _
    $region11: #{tpu_custom_call.1} parent=1 // pred_check_branch
      %14 = sbr.rel (0) target = $region13
    $region12: #{tpu_custom_call.1} parent=1 // pred_region
      _
    $region13: #{tpu_custom_call.1} parent=1 // pred_fallthru
      _
    %v15 = vld [vmem:[%s2] sm:$0xff]
    %v16 = vld [vmem:[%s2 + $0x8] sm:$0xff]
    %v17 = vld [vmem:[%s0] sm:$0xff]
    %19 = vset.pattern.permute.xlu0 0
    %20 = vperm.xlu0 %19, %v17
    %v21 = vpop.permute.xlu0 %20
    %v23 = vmul.f32 %v15, %v21
    %v24 = vmul.f32 %v16, %v21
    %v25 = vld [vmem:[%s1] sm:$0xff]
    %27 = vset.pattern.permute.xlu0 0
    %28 = vperm.xlu0 %27, %v25
    %v29 = vpop.permute.xlu0 %28
    %v31 = vadd.f32 %v23, %v29
    %v32 = vadd.f32 %v24, %v29
    %33 = vst [vmem:[#allocation2] sm:$0xff] %v31
    %34 = vst [vmem:[#allocation2 + $0x8] sm:$0xff] %v32
    // Predicated region
    $region14: #{tpu_custom_call.1} parent=1 // pred_check
      _
    $region15: #{tpu_custom_call.1} parent=1 // pred_check_branch
      %36 = sbr.rel (0) target = $region17
    $region16: #{tpu_custom_call.1} parent=1 // pred_region
      %s38 = ssub.s32 256, 256
      %39 = vsyncadd [#allocation3], %s38
      %s41 = sshll.u32 [#allocation2], 4
      %s42 = int_to_ptr.vmem [resolvable:$true] %s41
      %44 = dma.vmem_to_hbm [thread:$0]  %s42, 256, %s3, [#allocation3]
    $region17: #{tpu_custom_call.1} parent=1 // pred_fallthru
      _
    // Predicated region
    $region18: #{tpu_custom_call.1} parent=1 // pred_check
      _
    $region19: #{tpu_custom_call.1} parent=1 // pred_check_branch
      %46 = sbr.rel (0) target = $region21
    $region20: #{tpu_custom_call.1} parent=1 // pred_region
      %47 = dma.done [#allocation3], 256
    $region21: #{tpu_custom_call.1} parent=1 // pred_fallthru
      _
    %48 = vsyncpa [#allocation3], 1

</llo_original>
